<compile_context>
chip_gen: v5e
topology: v5e:2x2
jax: 0.10.0
libtpu: 0.0.40
codegen_flags: <defaults>
</compile_context>

<pallas_src>
import functools

import numpy as np
import jax
import jax.numpy as jnp
from jax.experimental import pallas as pl
from jax.experimental.pallas import tpu as pltpu


# ---------------------------------------------------------------------------
# Feature-construction fold:  feats = boxes @ T
# boxes = [sc_x, sc_y, ss_x, ss_y, oc_x, oc_y, os_x, os_y]
# ---------------------------------------------------------------------------
_T = np.array(
    [
        #  f0    f1    f2    f3    f4    f5    f6    f7
        [ 1.0,  0.0,  1.0,  0.0,  1.0,  0.0,  1.0,  0.0],  # sc_x
        [ 0.0,  1.0,  0.0,  1.0,  0.0,  1.0,  0.0,  1.0],  # sc_y
        [-0.5,  0.0,  0.5,  0.0, -0.5,  0.0,  0.5,  0.0],  # ss_x
        [ 0.0, -0.5,  0.0,  0.5,  0.0, -0.5,  0.0,  0.5],  # ss_y
        [-1.0,  0.0, -1.0,  0.0, -1.0,  0.0, -1.0,  0.0],  # oc_x
        [ 0.0, -1.0,  0.0, -1.0,  0.0, -1.0,  0.0, -1.0],  # oc_y
        [ 0.5,  0.0, -0.5,  0.0, -0.5,  0.0,  0.5,  0.0],  # os_x
        [ 0.0,  0.5,  0.0, -0.5,  0.0, -0.5,  0.0,  0.5],  # os_y
    ],
    dtype=np.float32,
)


def fold_w1(w1):
    """W1f = T @ W1 (8,128). Done once per call on the tiny weight, full f32."""
    return jnp.einsum("ij,jk->ik", jnp.asarray(_T), w1,
                      precision=jax.lax.Precision.HIGHEST)


def _round_up(x, m):
    return ((x + m - 1) // m) * m


def _choose_tile(m):
    # Row tile: multiple of 8 (sublane); a multiple of 128 for large problems
    # (MXU-friendly on v5e); small enough that double-buffered I/O tiles +
    # resident weights (~132 KB) + (TM,128) f32 activations stay far below the
    # v7x 64 MiB / 32 MiB-scoped VMEM budget.
    if m >= 512:
        return 512
    return _round_up(m, 8)


def _leaky_relu(x, negative_slope=0.01):
    # PyTorch nn.LeakyReLU default negative_slope = 0.01
    return jnp.where(x > 0, x, negative_slope * x)


# ---------------------------------------------------------------------------
# Kernel
# ---------------------------------------------------------------------------
def relation_ebm_kernel(boxes_ref, w1_ref, b1_ref, w2_ref, b2_ref,
                        w3_ref, b3_ref, w4t_ref, b4_ref, out_ref):
    x = boxes_ref[...]                                    # (TM, 8) f32

    # Layer 1: feature construction folded into W1 -> plain (TM,8)@(8,128).
    h = jnp.dot(x, w1_ref[...], preferred_element_type=jnp.float32)
    h = _leaky_relu(h + b1_ref[...])

    # Layers 2-3: optionally bf16 MXU operands, f32 accumulation + activations.
    mm = w2_ref.dtype
    h = jnp.dot(h.astype(mm), w2_ref[...], preferred_element_type=jnp.float32)
    h = _leaky_relu(h + b2_ref[...])
    h = jnp.dot(h.astype(mm), w3_ref[...], preferred_element_type=jnp.float32)
    h = _leaky_relu(h + b3_ref[...])

    # Final 128 -> 1 layer on the VPU/XLU (multiply + lane reduce) instead of
    # an N=1 MXU matmul.  (TM,1) store stays masked; acceptable for 4B/row.
    e = jnp.sum(h * w4t_ref[...], axis=-1, keepdims=True) + b4_ref[...]
    out_ref[...] = e.astype(out_ref.dtype)


# ---------------------------------------------------------------------------
# Wrapper
# ---------------------------------------------------------------------------
@functools.partial(jax.jit, static_argnames=("use_bf16",))
def relation_ebm_forward(sbox_centers, sbox_sizes, obox_centers, obox_sizes,
                         params, use_bf16=False):
    B, N, _ = sbox_centers.shape
    M = B * N
    w1, b1, w2, b2, w3, b3, w4, b4 = params

    # One (M, 8) activation slab: [sc_x, sc_y, ss_x, ss_y, oc_x, oc_y, os_x, os_y]
    boxes = jnp.concatenate(
        [sbox_centers, sbox_sizes, obox_centers, obox_sizes], axis=-1
    ).reshape(M, 8).astype(jnp.float32)

    TM = _choose_tile(M)
    M_pad = _round_up(M, TM)
    if M_pad != M:
        boxes = jnp.pad(boxes, ((0, M_pad - M), (0, 0)))

    w1f = fold_w1(w1)                     # (8, 128)
    w4t = jnp.transpose(w4)               # (1, 128)  for the VPU final layer
    mm_dtype = jnp.bfloat16 if use_bf16 else jnp.float32
    w2m = w2.astype(mm_dtype)
    w3m = w3.astype(mm_dtype)

    grid = (M_pad // TM,)
    resident = lambda shape: pl.BlockSpec(shape, lambda i: (0,) * len(shape))

    out = pl.pallas_call(
        relation_ebm_kernel,
        out_shape=jax.ShapeDtypeStruct((M_pad, 1), jnp.float32),
        grid_spec=pltpu.PrefetchScalarGridSpec(
            num_scalar_prefetch=0,
            grid=grid,
            in_specs=[
                pl.BlockSpec((TM, 8), lambda i: (i, 0)),   # boxes (row-tiled)
                resident((8, 128)),                         # W1 folded
                resident((1, 128)),                         # b1
                resident((128, 128)),                       # W2
                resident((1, 128)),                         # b2
                resident((128, 128)),                       # W3
                resident((1, 128)),                         # b3
                resident((1, 128)),                         # W4^T
                resident((1, 1)),                           # b4
            ],
            out_specs=pl.BlockSpec((TM, 1), lambda i: (i, 0)),
        ),
        compiler_params=pltpu.CompilerParams(
            dimension_semantics=("parallel",)),             # v7x: use both TCs
    )(boxes, w1f, b1, w2m, b2, w3m, b3, w4t, b4)

    return out[:M].reshape(B, N, 1)


# ---------------------------------------------------------------------------
# Params + references
# ---------------------------------------------------------------------------
def init_params(key):
    """Deterministic init mimicking PyTorch Linear default (U(-1/sqrt(fan_in), +))."""
    dims = [(8, 128), (128, 128), (128, 128), (128, 1)]
    params = []
    for fan_in, fan_out in dims:
        kw, kb, key = jax.random.split(key, 3)
        bound = 1.0 / float(np.sqrt(fan_in))
        w = jax.random.uniform(kw, (fan_in, fan_out), jnp.float32, -bound, bound)
        b = jax.random.uniform(kb, (1, fan_out), jnp.float32, -bound, bound)
        params += [w, b]
    return tuple(params)


def reference_forward(sc, ss, oc, osz, params):
    """Pure-JAX mirror of the PyTorch module (semantics check)."""
    w1, b1, w2, b2, w3, b3, w4, b4 = params
    subjs = jnp.concatenate([sc - ss / 2, sc + ss / 2], -1)
    objs = jnp.concatenate([oc - osz / 2, oc + osz / 2], -1)
    feats = jnp.concatenate([subjs - objs, subjs - objs[..., (2, 3, 0, 1)]], -1)
    h = jax.nn.leaky_relu(feats @ w1 + b1[0], 0.01)
    h = jax.nn.leaky_relu(h @ w2 + b2[0], 0.01)
    h = jax.nn.leaky_relu(h @ w3 + b3[0], 0.01)
    return h @ w4 + b4[0]


def folded_reference(boxes2d, w1f, b1, w2, b2, w3, b3, w4t, b4):
    """Pure-JAX mirror of exactly what the kernel computes (machinery check)."""
    h = jax.nn.leaky_relu(boxes2d @ w1f + b1, 0.01)
    h = jax.nn.leaky_relu(h @ w2 + b2, 0.01)
    h = jax.nn.leaky_relu(h @ w3 + b3, 0.01)
    return jnp.sum(h * w4t, axis=-1, keepdims=True) + b4


# ---------------------------------------------------------------------------
if __name__ == "__main__":
    key = jax.random.PRNGKey(0)
    kp, k1, k2, k3, k4 = jax.random.split(key, 5)
    params = init_params(kp)

    B, N_rel = 2, 8
    sbox_centers = jax.random.uniform(k1, (B, N_rel, 2), jnp.float32)
    sbox_sizes = jax.random.uniform(k2, (B, N_rel, 2), jnp.float32) * 0.5
    obox_centers = jax.random.uniform(k3, (B, N_rel, 2), jnp.float32)
    obox_sizes = jax.random.uniform(k4, (B, N_rel, 2), jnp.float32) * 0.5

    # Check 0 (host, float64): the fold matrix T reproduces the original
    # concat / (2,3,0,1)-permute feature construction exactly.
    nb = np.asarray(
        jnp.concatenate([sbox_centers, sbox_sizes, obox_centers, obox_sizes], -1)
        .reshape(-1, 8), dtype=np.float64)
    subjs_np = np.concatenate([nb[:, 0:2] - nb[:, 2:4] / 2, nb[:, 0:2] + nb[:, 2:4] / 2], -1)
    objs_np = np.concatenate([nb[:, 4:6] - nb[:, 6:8] / 2, nb[:, 4:6] + nb[:, 6:8] / 2], -1)
    feats_np = np.concatenate([subjs_np - objs_np, subjs_np - objs_np[:, (2, 3, 0, 1)]], -1)
    assert np.allclose(nb @ _T.astype(np.float64), feats_np, atol=1e-12), "fold matrix wrong"

    # f32 kernel run.
    out = relation_ebm_forward(sbox_centers, sbox_sizes, obox_centers, obox_sizes, params)
    out = jax.block_until_ready(out)
    assert out.shape == (B, N_rel, 1), out.shape

    # Tight check vs a pure-JAX mirror of the folded computation (identical
    # operands -> only accumulation-order differences).
    w1, b1, w2, b2, w3, b3, w4, b4 = params
    boxes2d = jnp.concatenate(
        [sbox_centers, sbox_sizes, obox_centers, obox_sizes], -1).reshape(-1, 8)
    folded = folded_reference(boxes2d, fold_w1(w1), b1, w2, b2, w3, b3,
                              w4.T, b4).reshape(B, N_rel, 1)
    assert jnp.allclose(out, folded, atol=1e-4, rtol=1e-4), "kernel vs folded ref mismatch"

    # Semantics check vs the faithful PyTorch-mirroring reference. Looser
    # tolerance: the weight fold changes matmul operand values, so the TPU's
    # default (reduced-precision) matmul mode can introduce ~1e-3-level drift.
    ref = reference_forward(sbox_centers, sbox_sizes, obox_centers, obox_sizes, params)
    assert jnp.allclose(out, ref, atol=2e-2, rtol=2e-2), "kernel vs module reference mismatch"

    # bf16-operand path (v5e/v6e MXU feedback): bf16 matmul operands,
    # f32 accumulation and f32 bias/LeakyReLU math.
    out_bf16 = jax.block_until_ready(
        relation_ebm_forward(sbox_centers, sbox_sizes, obox_centers, obox_sizes,
                             params, use_bf16=True))
    assert jnp.allclose(out_bf16, ref, atol=5e-2, rtol=5e-2), "bf16 path drifted too far"

    print("KERNEL_OK")
</pallas_src>

<mosaic_0001>
module attributes {stable_mosaic.version = 11 : i64} {
  func.func @relation_ebm_kernel(%arg0: i32, %arg1: memref<16x8xf32, #tpu.memory_space<vmem>>, %arg2: memref<8x128xf32, #tpu.memory_space<vmem>>, %arg3: memref<1x128xf32, #tpu.memory_space<vmem>>, %arg4: memref<128x128xf32, #tpu.memory_space<vmem>>, %arg5: memref<1x128xf32, #tpu.memory_space<vmem>>, %arg6: memref<128x128xf32, #tpu.memory_space<vmem>>, %arg7: memref<1x128xf32, #tpu.memory_space<vmem>>, %arg8: memref<1x128xf32, #tpu.memory_space<vmem>>, %arg9: memref<1x1xf32, #tpu.memory_space<vmem>>, %arg10: memref<16x1xf32, #tpu.memory_space<vmem>>) attributes {dimension_semantics = [#tpu.dimension_semantics<parallel>], iteration_bounds = array<i64: 1>, scalar_prefetch = 0 : i64, scratch_operands = 0 : i64, tpu.core_type = #tpu.core_type<tc>, window_params = [{transform_indices = @transform_0, window_bounds = array<i64: 16, 8>}, {pipeline_mode = #tpu.pipeline_mode<synchronous>, transform_indices = @transform_1, window_bounds = array<i64: 8, 128>}, {pipeline_mode = #tpu.pipeline_mode<synchronous>, transform_indices = @transform_2, window_bounds = array<i64: 1, 128>}, {pipeline_mode = #tpu.pipeline_mode<synchronous>, transform_indices = @transform_3, window_bounds = array<i64: 128, 128>}, {pipeline_mode = #tpu.pipeline_mode<synchronous>, transform_indices = @transform_4, window_bounds = array<i64: 1, 128>}, {pipeline_mode = #tpu.pipeline_mode<synchronous>, transform_indices = @transform_5, window_bounds = array<i64: 128, 128>}, {pipeline_mode = #tpu.pipeline_mode<synchronous>, transform_indices = @transform_6, window_bounds = array<i64: 1, 128>}, {pipeline_mode = #tpu.pipeline_mode<synchronous>, transform_indices = @transform_7, window_bounds = array<i64: 1, 128>}, {pipeline_mode = #tpu.pipeline_mode<synchronous>, transform_indices = @transform_8, window_bounds = array<i64: 1, 1>}, {transform_indices = @transform_9, window_bounds = array<i64: 16, 1>}]} {
    %c0 = arith.constant 0 : index
    %c0_0 = arith.constant 0 : index
    %0 = vector.load %arg1[%c0, %c0_0] : memref<16x8xf32, #tpu.memory_space<vmem>>, vector<16x8xf32>
    %c0_1 = arith.constant 0 : index
    %c0_2 = arith.constant 0 : index
    %1 = vector.load %arg2[%c0_1, %c0_2] : memref<8x128xf32, #tpu.memory_space<vmem>>, vector<8x128xf32>
    %cst = arith.constant dense<0.000000e+00> : vector<16x128xf32>
    %2 = tpu.matmul %0, %1, %cst {dimension_numbers = #tpu.dot_dimension_numbers<[1], [0], [0], [1], [0, 0, 1, 1], [], []>} : vector<16x8xf32>, vector<8x128xf32>, vector<16x128xf32> -> vector<16x128xf32>
    %c0_3 = arith.constant 0 : index
    %c0_4 = arith.constant 0 : index
    %3 = vector.load %arg3[%c0_3, %c0_4] : memref<1x128xf32, #tpu.memory_space<vmem>>, vector<1x128xf32>
    %4 = vector.broadcast %3 : vector<1x128xf32> to vector<16x128xf32>
    %5 = arith.addf %2, %4 : vector<16x128xf32>
    %cst_5 = arith.constant 0.000000e+00 : f32
    %6 = vector.broadcast %cst_5 : f32 to vector<16x128xf32>
    %7 = arith.cmpf ogt, %5, %6 : vector<16x128xf32>
    %cst_6 = arith.constant 0.00999999977 : f32
    %8 = vector.broadcast %cst_6 : f32 to vector<16x128xf32>
    %9 = arith.mulf %8, %5 : vector<16x128xf32>
    %10 = arith.select %7, %5, %9 : vector<16x128xi1>, vector<16x128xf32>
    %c0_7 = arith.constant 0 : index
    %c0_8 = arith.constant 0 : index
    %11 = vector.load %arg4[%c0_7, %c0_8] : memref<128x128xf32, #tpu.memory_space<vmem>>, vector<128x128xf32>
    %cst_9 = arith.constant dense<0.000000e+00> : vector<16x128xf32>
    %12 = tpu.matmul %10, %11, %cst_9 {dimension_numbers = #tpu.dot_dimension_numbers<[1], [0], [0], [1], [0, 0, 1, 1], [], []>} : vector<16x128xf32>, vector<128x128xf32>, vector<16x128xf32> -> vector<16x128xf32>
    %c0_10 = arith.constant 0 : index
    %c0_11 = arith.constant 0 : index
    %13 = vector.load %arg5[%c0_10, %c0_11] : memref<1x128xf32, #tpu.memory_space<vmem>>, vector<1x128xf32>
    %14 = vector.broadcast %13 : vector<1x128xf32> to vector<16x128xf32>
    %15 = arith.addf %12, %14 : vector<16x128xf32>
    %cst_12 = arith.constant 0.000000e+00 : f32
    %16 = vector.broadcast %cst_12 : f32 to vector<16x128xf32>
    %17 = arith.cmpf ogt, %15, %16 : vector<16x128xf32>
    %cst_13 = arith.constant 0.00999999977 : f32
    %18 = vector.broadcast %cst_13 : f32 to vector<16x128xf32>
    %19 = arith.mulf %18, %15 : vector<16x128xf32>
    %20 = arith.select %17, %15, %19 : vector<16x128xi1>, vector<16x128xf32>
    %c0_14 = arith.constant 0 : index
    %c0_15 = arith.constant 0 : index
    %21 = vector.load %arg6[%c0_14, %c0_15] : memref<128x128xf32, #tpu.memory_space<vmem>>, vector<128x128xf32>
    %cst_16 = arith.constant dense<0.000000e+00> : vector<16x128xf32>
    %22 = tpu.matmul %20, %21, %cst_16 {dimension_numbers = #tpu.dot_dimension_numbers<[1], [0], [0], [1], [0, 0, 1, 1], [], []>} : vector<16x128xf32>, vector<128x128xf32>, vector<16x128xf32> -> vector<16x128xf32>
    %c0_17 = arith.constant 0 : index
    %c0_18 = arith.constant 0 : index
    %23 = vector.load %arg7[%c0_17, %c0_18] : memref<1x128xf32, #tpu.memory_space<vmem>>, vector<1x128xf32>
    %24 = vector.broadcast %23 : vector<1x128xf32> to vector<16x128xf32>
    %25 = arith.addf %22, %24 : vector<16x128xf32>
    %cst_19 = arith.constant 0.000000e+00 : f32
    %26 = vector.broadcast %cst_19 : f32 to vector<16x128xf32>
    %27 = arith.cmpf ogt, %25, %26 : vector<16x128xf32>
    %cst_20 = arith.constant 0.00999999977 : f32
    %28 = vector.broadcast %cst_20 : f32 to vector<16x128xf32>
    %29 = arith.mulf %28, %25 : vector<16x128xf32>
    %30 = arith.select %27, %25, %29 : vector<16x128xi1>, vector<16x128xf32>
    %c0_21 = arith.constant 0 : index
    %c0_22 = arith.constant 0 : index
    %31 = vector.load %arg8[%c0_21, %c0_22] : memref<1x128xf32, #tpu.memory_space<vmem>>, vector<1x128xf32>
    %32 = vector.broadcast %31 : vector<1x128xf32> to vector<16x128xf32>
    %33 = arith.mulf %30, %32 : vector<16x128xf32>
    %cst_23 = arith.constant dense<0.000000e+00> : vector<16xf32>
    %34 = vector.multi_reduction <add>, %33, %cst_23 [1] : vector<16x128xf32> to vector<16xf32>
    %35 = vector.shape_cast %34 : vector<16xf32> to vector<16x1xf32>
    %c0_24 = arith.constant 0 : index
    %c0_25 = arith.constant 0 : index
    %36 = vector.load %arg9[%c0_24, %c0_25] : memref<1x1xf32, #tpu.memory_space<vmem>>, vector<1x1xf32>
    %37 = vector.broadcast %36 : vector<1x1xf32> to vector<16x1xf32>
    %38 = arith.addf %35, %37 : vector<16x1xf32>
    %c0_26 = arith.constant 0 : index
    %c0_27 = arith.constant 0 : index
    %39 = vector.load %arg10[%c0_26, %c0_27] : memref<16x1xf32, #tpu.memory_space<vmem>>, vector<16x1xf32>
    tpu.vector_store %arg10[%c0_26, %c0_27], %38 {strides = array<i32>} : memref<16x1xf32, #tpu.memory_space<vmem>>, vector<16x1xf32>,
    return
  }
  func.func @transform_0(%arg0: i32) -> (i32, i32) {
    %c0_i32 = arith.constant 0 : i32
    %c0_i32_0 = arith.constant 0 : i32
    return %arg0, %c0_i32 : i32, i32
  }
  func.func @transform_1(%arg0: i32) -> (i32, i32) {
    %c0_i32 = arith.constant 0 : i32
    %c0_i32_0 = arith.constant 0 : i32
    %c0_i32_1 = arith.constant 0 : i32
    return %c0_i32, %c0_i32_0 : i32, i32
  }
  func.func @transform_2(%arg0: i32) -> (i32, i32) {
    %c0_i32 = arith.constant 0 : i32
    %c0_i32_0 = arith.constant 0 : i32
    %c0_i32_1 = arith.constant 0 : i32
    return %c0_i32, %c0_i32_0 : i32, i32
  }
  func.func @transform_3(%arg0: i32) -> (i32, i32) {
    %c0_i32 = arith.constant 0 : i32
    %c0_i32_0 = arith.constant 0 : i32
    %c0_i32_1 = arith.constant 0 : i32
    return %c0_i32, %c0_i32_0 : i32, i32
  }
  func.func @transform_4(%arg0: i32) -> (i32, i32) {
    %c0_i32 = arith.constant 0 : i32
    %c0_i32_0 = arith.constant 0 : i32
    %c0_i32_1 = arith.constant 0 : i32
    return %c0_i32, %c0_i32_0 : i32, i32
  }
  func.func @transform_5(%arg0: i32) -> (i32, i32) {
    %c0_i32 = arith.constant 0 : i32
    %c0_i32_0 = arith.constant 0 : i32
    %c0_i32_1 = arith.constant 0 : i32
    return %c0_i32, %c0_i32_0 : i32, i32
  }
  func.func @transform_6(%arg0: i32) -> (i32, i32) {
    %c0_i32 = arith.constant 0 : i32
    %c0_i32_0 = arith.constant 0 : i32
    %c0_i32_1 = arith.constant 0 : i32
    return %c0_i32, %c0_i32_0 : i32, i32
  }
  func.func @transform_7(%arg0: i32) -> (i32, i32) {
    %c0_i32 = arith.constant 0 : i32
    %c0_i32_0 = arith.constant 0 : i32
    %c0_i32_1 = arith.constant 0 : i32
    return %c0_i32, %c0_i32_0 : i32, i32
  }
  func.func @transform_8(%arg0: i32) -> (i32, i32) {
    %c0_i32 = arith.constant 0 : i32
    %c0_i32_0 = arith.constant 0 : i32
    %c0_i32_1 = arith.constant 0 : i32
    return %c0_i32, %c0_i32_0 : i32, i32
  }
  func.func @transform_9(%arg0: i32) -> (i32, i32) {
    %c0_i32 = arith.constant 0 : i32
    %c0_i32_0 = arith.constant 0 : i32
    return %arg0, %c0_i32 : i32, i32
  }
}

</mosaic_0001>

<llo_original>
// kernel: relation_ebm_forward.1
$region0: #{relation_ebm_forward.1}
  #allocation0 [shape = 'u32[]', space=smem, size = 0x4, offset = 0x4, fixed_abs, tag = 'smem constant byte address 0x4 - core index']
  #allocation1 [shape = 'u32[72,128]{1,0:T(1,128)}', space=vmem, size = 0x9000, scoped, tag = 'internal scratch']
  #allocation2 [shape = 'f32[1,1]{1,0:T(1,128)S(1)}', space=vmem, size = 0x200, scoped, tag = 'scoped memory for relation_ebm_forward.1']
  %s0 = inlined_call_operand.vmem [shape: f32[16,8], index: 0, kind: input, shape index: {}]
  %s1 = inlined_call_operand.vmem [shape: f32[8,128], index: 1, kind: input, shape index: {}]
  %s2 = inlined_call_operand.vmem [shape: f32[1,128], index: 2, kind: input, shape index: {}]
  %s3 = inlined_call_operand.hbm [shape: f32[128,128], index: 3, kind: input, shape index: {}]
  %s4 = inlined_call_operand.vmem [shape: f32[1,128], index: 4, kind: input, shape index: {}]
  %s5 = inlined_call_operand.hbm [shape: f32[128,128], index: 5, kind: input, shape index: {}]
  %s6 = inlined_call_operand.vmem [shape: f32[1,128], index: 6, kind: input, shape index: {}]
  %s7 = inlined_call_operand.vmem [shape: f32[1,128], index: 7, kind: input, shape index: {}]
  %s8 = inlined_call_operand.<no memory space> [shape: f32[1,1], index: 8, kind: input, shape index: {}]
  %s9 = inlined_call_operand.vmem [shape: f32[16,1], index: 9, kind: output, shape index: {}]
  %s10 = sld [smem:[#allocation0]]
  $region54: #{relation_ebm_forward.1} parent=0
    _
  %s12 = ssub.s32 1, %s10
  %s13 = scalar_select 0, %s12, %s10
  %v14 = vstv %s8
  %15 = vst [vmem:[#allocation2] sm:$0x1] %v14
  $region1: #{relation_ebm_forward.1} parent=0
    #allocation3 [shape = 'u8[65536]{0}', space=vmem, size = 0x10000, scoped, tag = 'input window, operand 3, single buffered']
    #allocation4 [shape = 's32[1]{0}', space=sflag, size = 0x4, scoped, tag = 'scoped memory for relation_ebm_forward.1']
    #allocation5 [shape = 'u8[65536]{0}', space=vmem, size = 0x10000, scoped, tag = 'input window, operand 5, single buffered']
    #allocation6 [shape = 's32[1]{0}', space=sflag, size = 0x4, scoped, tag = 'scoped memory for relation_ebm_forward.1']
    %16 = vsyncpa [#allocation4], 0
    %17 = vsyncpa [#allocation6], 0
    // Predicated region
    $region2: #{relation_ebm_forward.1} parent=1 // pred_check
      _
    $region3: #{relation_ebm_forward.1} parent=1 // pred_check_branch
      %19 = sbr.rel (0) target = $region5
    $region4: #{relation_ebm_forward.1} parent=1 // pred_region
      _
    $region5: #{relation_ebm_forward.1} parent=1 // pred_fallthru
      _
    // Predicated region
    $region6: #{relation_ebm_forward.1} parent=1 // pred_check
      _
    $region7: #{relation_ebm_forward.1} parent=1 // pred_check_branch
      %21 = sbr.rel (0) target = $region9
    $region8: #{relation_ebm_forward.1} parent=1 // pred_region
      _
    $region9: #{relation_ebm_forward.1} parent=1 // pred_fallthru
      _
    // Predicated region
    $region10: #{relation_ebm_forward.1} parent=1 // pred_check
      _
    $region11: #{relation_ebm_forward.1} parent=1 // pred_check_branch
      %23 = sbr.rel (0) target = $region13
    $region12: #{relation_ebm_forward.1} parent=1 // pred_region
      _
    $region13: #{relation_ebm_forward.1} parent=1 // pred_fallthru
      _
    // Predicated region
    $region14: #{relation_ebm_forward.1} parent=1 // pred_check
      _
    $region15: #{relation_ebm_forward.1} parent=1 // pred_check_branch
      %25 = sbr.rel (0) target = $region17
    $region16: #{relation_ebm_forward.1} parent=1 // pred_region
      %27 = vsyncadd [#allocation4], 0
      %s28 = sshll.u32 %s3, 4
      %s29 = int_to_ptr.hbm [resolvable:$true] %s28
      %s30 = sshll.u32 [#allocation3], 4
      %s31 = int_to_ptr.vmem [resolvable:$true] %s30
      %36 = dma.hbm_to_vmem [thread:$0]  %s29, 2048, %s31, [#allocation4], 128, 128, 8
    $region17: #{relation_ebm_forward.1} parent=1 // pred_fallthru
      _
    // Predicated region
    $region18: #{relation_ebm_forward.1} parent=1 // pred_check
      _
    $region19: #{relation_ebm_forward.1} parent=1 // pred_check_branch
      %38 = sbr.rel (0) target = $region21
    $region20: #{relation_ebm_forward.1} parent=1 // pred_region
      _
    $region21: #{relation_ebm_forward.1} parent=1 // pred_fallthru
      _
    // Predicated region
    $region22: #{relation_ebm_forward.1} parent=1 // pred_check
      _
    $region23: #{relation_ebm_forward.1} parent=1 // pred_check_branch
      %40 = sbr.rel (0) target = $region25
    $region24: #{relation_ebm_forward.1} parent=1 // pred_region
      %42 = vsyncadd [#allocation6], 0
      %s43 = sshll.u32 %s5, 4
      %s44 = int_to_ptr.hbm [resolvable:$true] %s43
      %s45 = sshll.u32 [#allocation5], 4
      %s46 = int_to_ptr.vmem [resolvable:$true] %s45
      %51 = dma.hbm_to_vmem [thread:$0]  %s44, 2048, %s46, [#allocation6], 128, 128, 8
    $region25: #{relation_ebm_forward.1} parent=1 // pred_fallthru
      _
    // Predicated region
    $region26: #{relation_ebm_forward.1} parent=1 // pred_check
      _
    $region27: #{relation_ebm_forward.1} parent=1 // pred_check_branch
      %53 = sbr.rel (0) target = $region29
    $region28: #{relation_ebm_forward.1} parent=1 // pred_region
      _
    $region29: #{relation_ebm_forward.1} parent=1 // pred_fallthru
      _
    // Predicated region
    $region30: #{relation_ebm_forward.1} parent=1 // pred_check
      _
    $region31: #{relation_ebm_forward.1} parent=1 // pred_check_branch
      %55 = sbr.rel (0) target = $region33
    $region32: #{relation_ebm_forward.1} parent=1 // pred_region
      _
    $region33: #{relation_ebm_forward.1} parent=1 // pred_fallthru
      _
    // Predicated region
    $region34: #{relation_ebm_forward.1} parent=1 // pred_check
      _
    $region35: #{relation_ebm_forward.1} parent=1 // pred_check_branch
      %57 = sbr.rel (0) target = $region37
    $region36: #{relation_ebm_forward.1} parent=1 // pred_region
      _
    $region37: #{relation_ebm_forward.1} parent=1 // pred_fallthru
      _
    // Predicated region
    $region38: #{relation_ebm_forward.1} parent=1 // pred_check
      _
    $region39: #{relation_ebm_forward.1} parent=1 // pred_check_branch
      %59 = sbr.rel (0) target = $region41
    $region40: #{relation_ebm_forward.1} parent=1 // pred_region
      %61 = dma.done [#allocation4], 2048
    $region41: #{relation_ebm_forward.1} parent=1 // pred_fallthru
      _
    // Predicated region
    $region42: #{relation_ebm_forward.1} parent=1 // pred_check
      _
    $region43: #{relation_ebm_forward.1} parent=1 // pred_check_branch
      %63 = sbr.rel (0) target = $region45
    $region44: #{relation_ebm_forward.1} parent=1 // pred_region
      %65 = dma.done [#allocation6], 2048
    $region45: #{relation_ebm_forward.1} parent=1 // pred_fallthru
      _
    %v66 = vld [vmem:[%s0] sm:$0xff]
    %v67 = vld [vmem:[%s0 + $0x8] sm:$0xff]
    %v68 = vld [vmem:[%s1] sm:$0xff]
    %v69 = vld [vmem:[%s2] sm:$0x1]
    %v71 = vperm.slane %v69, 0
    %vm73 = vcmask 64512
    %v75 = vsel %vm73, %v66, 0
    %v78 = vsel %vm73, %v67, 0
    %80 = vmatpush.msra.mxu0 0.0
    %81 = vmatpush.msra.mxu0 0.0
    %82 = vmatpush.msra.mxu0 0.0
    %83 = vmatpush.msra.mxu0 0.0
    %84 = vmatpush.msra.mxu0 0.0
    %85 = vmatpush.msra.mxu0 0.0
    %86 = vmatpush.msra.mxu0 0.0
    %87 = vmatpush.msra.mxu0 0.0
    %88 = vmatpush.msra.mxu0 0.0
    %89 = vmatpush.msra.mxu0 0.0
    %90 = vmatpush.msra.mxu0 0.0
    %91 = vmatpush.msra.mxu0 0.0
    %92 = vmatpush.msra.mxu0 0.0
    %93 = vmatpush.msra.mxu0 0.0
    %94 = vmatpush.msra.mxu0 0.0
    %95 = vmatpush.msra.mxu0 %v68
    %96 = vmatmul.f32.gmra.mxu0 %v75
    %v97 = vpop.f32.mrf.mxu0
    %v98 = vadd.f32 %v71, %v97
    %99 = vmatmul.f32.gmra.mxu0 %v78
    %v100 = vpop.f32.mrf.mxu0
    %v101 = vadd.f32 %v71, %v100
    %102 = vdwg.mxu0
    %vm103 = vcmp.gt.f32.partialorder %v98, 0.0
    %vm104 = vcmp.gt.f32.partialorder %v101, 0.0
    %v105 = vmul.f32 %v98, 0.01
    %v106 = vmul.f32 %v101, 0.01
    %v107 = vsel %vm103, %v98, %v105
    %v108 = vsel %vm104, %v101, %v106
    %v109 = vld [vmem:[#allocation3] sm:$0xff]
    %v110 = vld [vmem:[#allocation3 + $0x8] sm:$0xff]
    %v111 = vld [vmem:[#allocation3 + $0x10] sm:$0xff]
    %v112 = vld [vmem:[#allocation3 + $0x18] sm:$0xff]
    %v113 = vld [vmem:[#allocation3 + $0x20] sm:$0xff]
    %v114 = vld [vmem:[#allocation3 + $0x28] sm:$0xff]
    %v115 = vld [vmem:[#allocation3 + $0x30] sm:$0xff]
    %v116 = vld [vmem:[#allocation3 + $0x38] sm:$0xff]
    %v117 = vld [vmem:[#allocation3 + $0x40] sm:$0xff]
    %v118 = vld [vmem:[#allocation3 + $0x48] sm:$0xff]
    %v119 = vld [vmem:[#allocation3 + $0x50] sm:$0xff]
    %v120 = vld [vmem:[#allocation3 + $0x58] sm:$0xff]
    %v121 = vld [vmem:[#allocation3 + $0x60] sm:$0xff]
    %v122 = vld [vmem:[#allocation3 + $0x68] sm:$0xff]
    %v123 = vld [vmem:[#allocation3 + $0x70] sm:$0xff]
    %v124 = vld [vmem:[#allocation3 + $0x78] sm:$0xff]
    %v125 = vld [vmem:[%s4] sm:$0x1]
    %v127 = vperm.slane %v125, 0
    %129 = vmatpush.msra.mxu0 %v124
    %130 = vmatpush.msra.mxu0 %v123
    %131 = vmatpush.msra.mxu0 %v122
    %132 = vmatpush.msra.mxu0 %v121
    %133 = vmatpush.msra.mxu0 %v120
    %134 = vmatpush.msra.mxu0 %v119
    %135 = vmatpush.msra.mxu0 %v118
    %136 = vmatpush.msra.mxu0 %v117
    %137 = vmatpush.msra.mxu0 %v116
    %138 = vmatpush.msra.mxu0 %v115
    %139 = vmatpush.msra.mxu0 %v114
    %140 = vmatpush.msra.mxu0 %v113
    %141 = vmatpush.msra.mxu0 %v112
    %142 = vmatpush.msra.mxu0 %v111
    %143 = vmatpush.msra.mxu0 %v110
    %144 = vmatpush.msra.mxu0 %v109
    %145 = vmatmul.f32.gmra.mxu0 %v107
    %v146 = vpop.f32.mrf.mxu0
    %v147 = vadd.f32 %v127, %v146
    %148 = vmatmul.f32.gmra.mxu0 %v108
    %v149 = vpop.f32.mrf.mxu0
    %v150 = vadd.f32 %v127, %v149
    %151 = vdwg.mxu0
    %vm152 = vcmp.gt.f32.partialorder %v147, 0.0
    %vm153 = vcmp.gt.f32.partialorder %v150, 0.0
    %v154 = vmul.f32 %v147, 0.01
    %v155 = vmul.f32 %v150, 0.01
    %v156 = vsel %vm152, %v147, %v154
    %v157 = vsel %vm153, %v150, %v155
    %v158 = vld [vmem:[#allocation5] sm:$0xff]
    %v159 = vld [vmem:[#allocation5 + $0x8] sm:$0xff]
    %v160 = vld [vmem:[#allocation5 + $0x10] sm:$0xff]
    %v161 = vld [vmem:[#allocation5 + $0x18] sm:$0xff]
    %v162 = vld [vmem:[#allocation5 + $0x20] sm:$0xff]
    %v163 = vld [vmem:[#allocation5 + $0x28] sm:$0xff]
    %v164 = vld [vmem:[#allocation5 + $0x30] sm:$0xff]
    %v165 = vld [vmem:[#allocation5 + $0x38] sm:$0xff]
    %v166 = vld [vmem:[#allocation5 + $0x40] sm:$0xff]
    %v167 = vld [vmem:[#allocation5 + $0x48] sm:$0xff]
    %v168 = vld [vmem:[#allocation5 + $0x50] sm:$0xff]
    %v169 = vld [vmem:[#allocation5 + $0x58] sm:$0xff]
    %v170 = vld [vmem:[#allocation5 + $0x60] sm:$0xff]
    %v171 = vld [vmem:[#allocation5 + $0x68] sm:$0xff]
    %v172 = vld [vmem:[#allocation5 + $0x70] sm:$0xff]
    %v173 = vld [vmem:[#allocation5 + $0x78] sm:$0xff]
    %v174 = vld [vmem:[%s6] sm:$0x1]
    %v176 = vperm.slane %v174, 0
    %178 = vmatpush.msra.mxu0 %v173
    %179 = vmatpush.msra.mxu0 %v172
    %180 = vmatpush.msra.mxu0 %v171
    %181 = vmatpush.msra.mxu0 %v170
    %182 = vmatpush.msra.mxu0 %v169
    %183 = vmatpush.msra.mxu0 %v168
    %184 = vmatpush.msra.mxu0 %v167
    %185 = vmatpush.msra.mxu0 %v166
    %186 = vmatpush.msra.mxu0 %v165
    %187 = vmatpush.msra.mxu0 %v164
    %188 = vmatpush.msra.mxu0 %v163
    %189 = vmatpush.msra.mxu0 %v162
    %190 = vmatpush.msra.mxu0 %v161
    %191 = vmatpush.msra.mxu0 %v160
    %192 = vmatpush.msra.mxu0 %v159
    %193 = vmatpush.msra.mxu0 %v158
    %194 = vmatmul.f32.gmra.mxu0 %v156
    %v195 = vpop.f32.mrf.mxu0
    %v196 = vadd.f32 %v176, %v195
    %197 = vmatmul.f32.gmra.mxu0 %v157
    %v198 = vpop.f32.mrf.mxu0
    %v199 = vadd.f32 %v176, %v198
    %200 = vdwg.mxu0
    %vm201 = vcmp.gt.f32.partialorder %v196, 0.0
    %vm202 = vcmp.gt.f32.partialorder %v199, 0.0
    %v203 = vmul.f32 %v196, 0.01
    %v204 = vmul.f32 %v199, 0.01
    %v205 = vsel %vm201, %v196, %v203
    %v206 = vsel %vm202, %v199, %v204
    %v207 = vld [vmem:[%s7] sm:$0x1]
    %v209 = vperm.slane %v207, 0
    %v211 = vmul.f32 %v205, %v209
    %v212 = vmul.f32 %v206, %v209
    %213 = vadd.xlane.f32.xlu0 %v211
    %v214 = vpop.xlane.xlu0 %213
    %215 = vadd.xlane.f32.xlu0 %v212
    %v216 = vpop.xlane.xlu0 %215
    %v217 = vld [vmem:[#allocation2] sm:$0x1]
    %v219 = vperm.slane %v217, 0
    %v221 = vadd.f32 %v214, %v219
    %v222 = vadd.f32 %v216, %v219
    %vm223 = vcmask 7168
    %224 = vst.msk [vmem:[%s9] sm:$0xff] %vm223, %v221
    %225 = vst.msk [vmem:[%s9 + $0x8] sm:$0xff] %vm223, %v222
    // Predicated region
    $region46: #{relation_ebm_forward.1} parent=1 // pred_check
      _
    $region47: #{relation_ebm_forward.1} parent=1 // pred_check_branch
      %227 = sbr.rel (0) target = $region49
    $region48: #{relation_ebm_forward.1} parent=1 // pred_region
      _
    $region49: #{relation_ebm_forward.1} parent=1 // pred_fallthru
      _
    // Predicated region
    $region50: #{relation_ebm_forward.1} parent=1 // pred_check
      _
    $region51: #{relation_ebm_forward.1} parent=1 // pred_check_branch
      %229 = sbr.rel (0) target = $region53
    $region52: #{relation_ebm_forward.1} parent=1 // pred_region
      _
    $region53: #{relation_ebm_forward.1} parent=1 // pred_fallthru
      _
    %230 = vsyncpa [#allocation4], 1
    %231 = vsyncpa [#allocation6], 1

</llo_original>
